<compile_context>
chip_gen: v5e
topology: v5e:2x2
jax: 0.10.0
libtpu: 0.0.40
codegen_flags: <defaults>
</compile_context>

<pallas_src>
import functools

import jax
import jax.numpy as jnp
from jax.experimental import pallas as pl
from jax.experimental.pallas import tpu as pltpu

LANES = 128                        # vreg lane width
MAX_TILE_ROWS = 2048               # 2048 x 128 x 4B = 1 MiB per f32 input block
DEFAULT_MIN_PALLAS_ELEMS = 1 << 17  # below this, plain jnp fuses better
VMEM_LIMIT_BYTES = 32 * 1024 * 1024


def _round_down(x: int, m: int) -> int:
    return (x // m) * m


def _num_tensorcore_splits() -> int:
    """2 on v7x-class chips (two TensorCores per chip), else 1."""
    try:
        kind = jax.devices()[0].device_kind.lower()
    except Exception:
        return 1
    return 2 if ("v7" in kind or "7x" in kind) else 1


def _sublane_multiple(dtype) -> int:
    """Minimum sublane tile for a dtype: 8 (4B), 16 (2B), 32 (1B)."""
    itemsize = int(jnp.dtype(dtype).itemsize)
    return max(8, 32 // max(itemsize, 1))


def _sse_kernel(a_ref, b_ref, o_ref):
    """Accumulate sum((a - b)^2) partials into an (8, LANES) f32 block."""
    @pl.when(pl.program_id(1) == 0)
    def _init():
        o_ref[...] = jnp.zeros_like(o_ref)

    # Native-dtype blocks streamed from HBM; upcast to f32 on the VPU.
    d = a_ref[...].astype(jnp.float32) - b_ref[...].astype(jnp.float32)
    sq = d * d
    # vreg-tree partial sum: (tile_rows, 128) -> (tile_rows//8, 8, 128) -> (8, 128).
    # Pure vreg adds; the final cross-sublane/lane reduce happens in the wrapper.
    o_ref[...] += jnp.sum(sq.reshape(-1, 8, LANES), axis=0)


def _sse_sum(a, b, *, min_pallas_elems=DEFAULT_MIN_PALLAS_ELEMS):
    """sum((a - b)**2) in float32, streamed through a Pallas TPU kernel."""
    n = int(a.size)
    assert int(b.size) == n, "operand pair must have equal element counts"
    if n == 0:
        return jnp.zeros((), jnp.float32)

    def jnp_sse(x, y):
        return jnp.sum((jnp.ravel(x).astype(jnp.float32)
                        - jnp.ravel(y).astype(jnp.float32)) ** 2)

    sub = max(_sublane_multiple(a.dtype), _sublane_multiple(b.dtype))

    # Small-size fallback: below the threshold the pallas_call fixed overhead
    # dominates and blocking XLA fusion with the producer (vjp) is a net loss.
    if n < max(int(min_pallas_elems), sub * LANES):
        return jnp_sse(a, b)

    flat_a, flat_b = jnp.ravel(a), jnp.ravel(b)
    rem = n % LANES
    if rem:
        # Ragged tail only: one zero-pad pass (both members padded with 0, so
        # padded positions contribute exactly 0).  The aligned case
        # (n % 128 == 0) is copy-free: ravel + reshape of a contiguous array.
        pad = LANES - rem
        flat_a = jnp.pad(flat_a, (0, pad))
        flat_b = jnp.pad(flat_b, (0, pad))
    rows = flat_a.shape[0] // LANES
    a2d = flat_a.reshape(rows, LANES)
    b2d = flat_b.reshape(rows, LANES)

    tile_rows = min(MAX_TILE_ROWS, _round_down(rows, sub))
    n_blocks = rows // tile_rows
    splits = max(1, min(_num_tensorcore_splits(), n_blocks))
    tiles_per_split = n_blocks // splits
    covered_rows = splits * tiles_per_split * tile_rows
    n_covered = covered_rows * LANES

    def data_spec():
        return pl.BlockSpec((tile_rows, LANES),
                            lambda c, i: (c * tiles_per_split + i, 0))

    cost = pl.CostEstimate(
        flops=3 * n_covered,
        transcendentals=0,
        bytes_accessed=(n_covered * (a2d.dtype.itemsize + b2d.dtype.itemsize)
                        + splits * 8 * LANES * 4))

    partials = pl.pallas_call(
        _sse_kernel,
        out_shape=jax.ShapeDtypeStruct((splits * 8, LANES), jnp.float32),
        grid_spec=pltpu.PrefetchScalarGridSpec(
            num_scalar_prefetch=0,
            grid=(splits, tiles_per_split),
            in_specs=[data_spec(), data_spec()],
            out_specs=pl.BlockSpec((8, LANES), lambda c, i: (c, 0)),
        ),
        compiler_params=pltpu.CompilerParams(
            dimension_semantics=("parallel", "arbitrary"),
            vmem_limit_bytes=VMEM_LIMIT_BYTES),
        cost_estimate=cost,
    )(a2d, b2d)

    total = jnp.sum(partials)   # final reduce of splits*8 x 128 floats in XLA

    if covered_rows < rows:
        # Leftover blocks + rows (< splits * tile_rows rows): tiny fused jnp
        # epilogue instead of streaming/masking a padded boundary block.
        total = total + jnp_sse(a2d[covered_rows:], b2d[covered_rows:])
    return total


def pallas_loss_terms(outputs, targets, gradients, targets2,
                      gradient_weight, value_weight=1.0,
                      *, min_pallas_elems=DEFAULT_MIN_PALLAS_ELEMS):
    """value_weight * sum((outputs-targets)^2)
       + gradient_weight * sum((gradients-targets2)^2)

    Each operand pair is tiled independently; the weights are applied on the
    two scalar partial losses (works for Python floats or traced values).
    """
    mse = _sse_sum(outputs, targets, min_pallas_elems=min_pallas_elems)
    gmse = _sse_sum(gradients, targets2, min_pallas_elems=min_pallas_elems)
    return value_weight * mse + gradient_weight * gmse


def custom_loss(model_fn, inputs, targets, targets2, gradient_weight,
                value_weight=1.0, *, min_pallas_elems=DEFAULT_MIN_PALLAS_ELEMS):
    """Full CustomLoss.forward equivalent.

    torch.autograd.grad(outputs, inputs, grad_outputs=ones_like(outputs))
    == VJP of the inputs->outputs map evaluated at a ones cotangent.
    """
    # TODO(synk): the autograd.grad step has no in-kernel Pallas equivalent;
    # it is expressed with jax.vjp outside the kernel.
    outputs, vjp_fn = jax.vjp(model_fn, inputs)
    (gradients,) = vjp_fn(jnp.ones_like(outputs))
    return pallas_loss_terms(outputs, targets, gradients, targets2,
                             gradient_weight, value_weight,
                             min_pallas_elems=min_pallas_elems)


def _reference_loss(model_fn, inputs, targets, targets2,
                    gradient_weight, value_weight=1.0):
    outputs, vjp_fn = jax.vjp(model_fn, inputs)
    (gradients,) = vjp_fn(jnp.ones_like(outputs))
    mse = jnp.sum((outputs - targets) ** 2)
    gmse = jnp.sum((gradients - targets2) ** 2)
    return value_weight * mse + gradient_weight * gmse


if __name__ == "__main__":
    key = jax.random.PRNGKey(0)
    k_x, k_w, k_b, k_t, k_t2 = jax.random.split(key, 5)

    batch, in_dim, out_dim = 256, 32, 32

    # Deterministic synthetic "upstream network" producing outputs from inputs
    # (stands in for the VdP surrogate model whose graph autograd walks).
    W = jax.random.normal(k_w, (in_dim, out_dim), dtype=jnp.float32) * 0.1
    b = jax.random.normal(k_b, (out_dim,), dtype=jnp.float32) * 0.1

    def model_fn(x):
        return jnp.tanh(x @ W + b)

    inputs = jax.random.normal(k_x, (batch, in_dim), dtype=jnp.float32)
    targets = jax.random.normal(k_t, (batch, out_dim), dtype=jnp.float32)
    targets2 = jax.random.normal(k_t2, (batch, in_dim), dtype=jnp.float32)

    gradient_weight = jnp.float32(0.5)   # traced weights (no float() baking)
    value_weight = jnp.float32(1.0)

    # min_pallas_elems=0 forces the Pallas path at this (small) demo size so
    # the kernel is actually exercised; production default keeps the fallback.
    loss_fn = jax.jit(functools.partial(custom_loss, model_fn,
                                        min_pallas_elems=0))
    loss = loss_fn(inputs, targets, targets2, gradient_weight, value_weight)
    loss = jax.block_until_ready(loss)

    ref = _reference_loss(model_fn, inputs, targets, targets2,
                          gradient_weight, value_weight)
    ref = jax.block_until_ready(ref)

    assert jnp.allclose(loss, ref, rtol=1e-4, atol=1e-4), (loss, ref)
    print("KERNEL_OK")
</pallas_src>

<mosaic_0001>
module attributes {stable_mosaic.version = 11 : i64} {
  func.func @_sse_kernel(%arg0: i32, %arg1: i32, %arg2: memref<64x128xf32, #tpu.memory_space<vmem>>, %arg3: memref<64x128xf32, #tpu.memory_space<vmem>>, %arg4: memref<8x128xf32, #tpu.memory_space<vmem>>) attributes {dimension_semantics = [#tpu.dimension_semantics<parallel>, #tpu.dimension_semantics<arbitrary>], iteration_bounds = array<i64: 1, 1>, scalar_prefetch = 0 : i64, scratch_operands = 0 : i64, tpu.core_type = #tpu.core_type<tc>, window_params = [{transform_indices = @transform_0, window_bounds = array<i64: 64, 128>}, {transform_indices = @transform_1, window_bounds = array<i64: 64, 128>}, {transform_indices = @transform_2, window_bounds = array<i64: 8, 128>}]} {
    %c0_i32 = arith.constant 0 : i32
    %0 = arith.cmpi eq, %arg1, %c0_i32 : i32
    %1 = arith.extui %0 : i1 to i32
    %c0_i32_0 = arith.constant 0 : i32
    %2 = arith.cmpi ne, %1, %c0_i32_0 : i32
    scf.if %2 {
      %cst_8 = arith.constant 0.000000e+00 : f32
      %12 = vector.broadcast %cst_8 : f32 to vector<8x128xf32>
      %c0_9 = arith.constant 0 : index
      %c0_10 = arith.constant 0 : index
      %13 = vector.load %arg4[%c0_9, %c0_10] : memref<8x128xf32, #tpu.memory_space<vmem>>, vector<8x128xf32>
      tpu.vector_store %arg4[%c0_9, %c0_10], %12 {strides = array<i32>} : memref<8x128xf32, #tpu.memory_space<vmem>>, vector<8x128xf32>,
    } else {
    }
    %c0 = arith.constant 0 : index
    %c0_1 = arith.constant 0 : index
    %3 = vector.load %arg2[%c0, %c0_1] : memref<64x128xf32, #tpu.memory_space<vmem>>, vector<64x128xf32>
    %c0_2 = arith.constant 0 : index
    %c0_3 = arith.constant 0 : index
    %4 = vector.load %arg3[%c0_2, %c0_3] : memref<64x128xf32, #tpu.memory_space<vmem>>, vector<64x128xf32>
    %5 = arith.subf %3, %4 : vector<64x128xf32>
    %6 = arith.mulf %5, %5 : vector<64x128xf32>
    %c0_4 = arith.constant 0 : index
    %c0_5 = arith.constant 0 : index
    %7 = vector.load %arg4[%c0_4, %c0_5] : memref<8x128xf32, #tpu.memory_space<vmem>>, vector<8x128xf32>
    %8 = vector.shape_cast %6 : vector<64x128xf32> to vector<8x8x128xf32>
    %cst = arith.constant dense<0.000000e+00> : vector<8x128xf32>
    %9 = vector.multi_reduction <add>, %8, %cst [0] : vector<8x8x128xf32> to vector<8x128xf32>
    %10 = arith.addf %7, %9 : vector<8x128xf32>
    %c0_6 = arith.constant 0 : index
    %c0_7 = arith.constant 0 : index
    %11 = vector.load %arg4[%c0_6, %c0_7] : memref<8x128xf32, #tpu.memory_space<vmem>>, vector<8x128xf32>
    tpu.vector_store %arg4[%c0_6, %c0_7], %10 {strides = array<i32>} : memref<8x128xf32, #tpu.memory_space<vmem>>, vector<8x128xf32>,
    return
  }
  func.func @transform_0(%arg0: i32, %arg1: i32) -> (i32, i32) {
    %c1_i32 = arith.constant 1 : i32
    %0 = arith.muli %arg0, %c1_i32 : i32
    %1 = arith.addi %0, %arg1 : i32
    %c0_i32 = arith.constant 0 : i32
    %c0_i32_0 = arith.constant 0 : i32
    return %1, %c0_i32 : i32, i32
  }
  func.func @transform_1(%arg0: i32, %arg1: i32) -> (i32, i32) {
    %c1_i32 = arith.constant 1 : i32
    %0 = arith.muli %arg0, %c1_i32 : i32
    %1 = arith.addi %0, %arg1 : i32
    %c0_i32 = arith.constant 0 : i32
    %c0_i32_0 = arith.constant 0 : i32
    return %1, %c0_i32 : i32, i32
  }
  func.func @transform_2(%arg0: i32, %arg1: i32) -> (i32, i32) {
    %c0_i32 = arith.constant 0 : i32
    %c0_i32_0 = arith.constant 0 : i32
    return %arg0, %c0_i32 : i32, i32
  }
}

</mosaic_0001>

<llo_original>
// kernel: custom_loss.2
$region0: #{custom_loss.2}
  #allocation0 [shape = 'u32[]', space=smem, size = 0x4, offset = 0x4, fixed_abs, tag = 'smem constant byte address 0x4 - core index']
  #allocation1 [shape = 'u32[72,128]{1,0:T(1,128)}', space=vmem, size = 0x9000, scoped, tag = 'internal scratch']
  %s0 = inlined_call_operand.vmem [shape: f32[64,128], index: 0, kind: input, shape index: {}]
  %s1 = inlined_call_operand.vmem [shape: f32[64,128], index: 1, kind: input, shape index: {}]
  %s2 = inlined_call_operand.vmem [shape: f32[8,128], index: 2, kind: output, shape index: {}]
  %s3 = sld [smem:[#allocation0]]
  $region22: #{custom_loss.2} parent=0
    _
  %s5 = ssub.s32 1, %s3
  %s6 = scalar_select 0, %s5, %s3
  // Predicated region
  $region2: #{custom_loss.2} parent=0 // pred_check
    _
  $region3: #{custom_loss.2} parent=0 // pred_check_branch
    %8 = sbr.rel (0) target = $region5
  $region4: #{custom_loss.2} parent=0 // pred_region
    %s9 = sadd.s32 0, 0
    %s10 = smul.u32 8, %s9
    %p11 = scmp.lt.s32.totalorder %s10, 7
    %s12 = scalar_select %p11, %s10, 7
    %s13 = smul.addr %s12, 8
    %s14 = scalar_lea.vmem %s0, %s13
    %s15 = sadd.s32 0, 0
    %s16 = smul.u32 8, %s15
  $region5: #{custom_loss.2} parent=0 // pred_fallthru
    _
  // Predicated region
  $region6: #{custom_loss.2} parent=0 // pred_check
    _
  $region7: #{custom_loss.2} parent=0 // pred_check_branch
    %18 = sbr.rel (0) target = $region9
  $region8: #{custom_loss.2} parent=0 // pred_region
    %s19 = sadd.s32 0, 0
    %s20 = smul.u32 8, %s19
    %p21 = scmp.lt.s32.totalorder %s20, 7
    %s22 = scalar_select %p21, %s20, 7
    %s23 = smul.addr %s22, 8
    %s24 = scalar_lea.vmem %s1, %s23
    %s25 = sadd.s32 0, 0
    %s26 = smul.u32 8, %s25
  $region9: #{custom_loss.2} parent=0 // pred_fallthru
    _
  %s27 = sadd.s32 0, 0
  %s28 = smul.u32 8, %s27
  %p29 = scmp.lt.s32.totalorder %s28, 7
  %s30 = scalar_select %p29, %s28, 7
  %s31 = smul.addr %s30, 8
  %s32 = scalar_lea.vmem %s0, %s31
  %s33 = sadd.s32 0, 0
  %s34 = smul.u32 8, %s33
  %p35 = scmp.lt.s32.totalorder %s34, 7
  %s36 = scalar_select %p35, %s34, 7
  %s37 = smul.addr %s36, 8
  %s38 = scalar_lea.vmem %s1, %s37
  %s39 = sadd.s32 0, 0
  %s40 = smul.u32 8, %s39
  %p41 = scmp.lt.s32.totalorder %s40, 7
  %s42 = scalar_select %p41, %s40, 7
  %s43 = smul.addr %s42, 8
  %s44 = scalar_lea.vmem %s0, %s43
  %s45 = sadd.s32 0, 0
  %s46 = smul.u32 8, %s45
  %s47 = sadd.s32 0, 0
  %s48 = smul.u32 8, %s47
  %p49 = scmp.lt.s32.totalorder %s48, 7
  %s50 = scalar_select %p49, %s48, 7
  %s51 = smul.addr %s50, 8
  %s52 = scalar_lea.vmem %s1, %s51
  %s53 = sadd.s32 0, 0
  %s54 = smul.u32 8, %s53
  %p55 = scmp.eq.s32.totalorder 0, 0
  // Predicated region
  $region10: #{custom_loss.2} parent=0 // pred_check
    %p56 = pneg %p55
  $region11: #{custom_loss.2} parent=0 // pred_check_branch
    %58 = sbr.rel (%p56) target = $region13
  $region12: #{custom_loss.2} parent=0 // pred_region
    %59 = vst [vmem:[%s2] sm:$0xff] 0.0
  $region13: #{custom_loss.2} parent=0 // pred_fallthru
    _
  %v60 = vld [vmem:[%s44] sm:$0xff]
  %v61 = vld [vmem:[%s44 + $0x8] sm:$0xff]
  %v62 = vld [vmem:[%s44 + $0x10] sm:$0xff]
  %v63 = vld [vmem:[%s44 + $0x18] sm:$0xff]
  %v64 = vld [vmem:[%s44 + $0x20] sm:$0xff]
  %v65 = vld [vmem:[%s44 + $0x28] sm:$0xff]
  %v66 = vld [vmem:[%s44 + $0x30] sm:$0xff]
  %v67 = vld [vmem:[%s44 + $0x38] sm:$0xff]
  %v68 = vld [vmem:[%s52] sm:$0xff]
  %v69 = vld [vmem:[%s52 + $0x8] sm:$0xff]
  %v70 = vld [vmem:[%s52 + $0x10] sm:$0xff]
  %v71 = vld [vmem:[%s52 + $0x18] sm:$0xff]
  %v72 = vld [vmem:[%s52 + $0x20] sm:$0xff]
  %v73 = vld [vmem:[%s52 + $0x28] sm:$0xff]
  %v74 = vld [vmem:[%s52 + $0x30] sm:$0xff]
  %v75 = vld [vmem:[%s52 + $0x38] sm:$0xff]
  %v76 = vsub.f32 %v60, %v68
  %v77 = vsub.f32 %v61, %v69
  %v78 = vsub.f32 %v62, %v70
  %v79 = vsub.f32 %v63, %v71
  %v80 = vsub.f32 %v64, %v72
  %v81 = vsub.f32 %v65, %v73
  %v82 = vsub.f32 %v66, %v74
  %v83 = vsub.f32 %v67, %v75
  %v84 = vmul.f32 %v76, %v76
  %v85 = vmul.f32 %v77, %v77
  %v86 = vmul.f32 %v78, %v78
  %v87 = vmul.f32 %v79, %v79
  %v88 = vmul.f32 %v80, %v80
  %v89 = vmul.f32 %v81, %v81
  %v90 = vmul.f32 %v82, %v82
  %v91 = vmul.f32 %v83, %v83
  %v92 = vld [vmem:[%s2] sm:$0xff]
  %v93 = vadd.f32 %v84, %v85
  %v94 = vadd.f32 %v93, %v86
  %v95 = vadd.f32 %v94, %v87
  %v96 = vadd.f32 %v95, %v88
  %v97 = vadd.f32 %v96, %v89
  %v98 = vadd.f32 %v97, %v90
  %v99 = vadd.f32 %v98, %v91
  %v100 = vadd.f32 %v92, %v99
  %101 = vst [vmem:[%s2] sm:$0xff] %v100
  // Predicated region
  $region14: #{custom_loss.2} parent=0 // pred_check
    _
  $region15: #{custom_loss.2} parent=0 // pred_check_branch
    %103 = sbr.rel (0) target = $region17
  $region16: #{custom_loss.2} parent=0 // pred_region
    _
  $region17: #{custom_loss.2} parent=0 // pred_fallthru
    _
  // Predicated region
  $region18: #{custom_loss.2} parent=0 // pred_check
    _
  $region19: #{custom_loss.2} parent=0 // pred_check_branch
    %105 = sbr.rel (0) target = $region21
  $region20: #{custom_loss.2} parent=0 // pred_region
    _
  $region21: #{custom_loss.2} parent=0 // pred_fallthru
    _

</llo_original>
